<compile_context>
chip_gen: v6e
topology: v6e:2x2x1
jax: 0.10.0
libtpu: 0.0.40
codegen_flags: <defaults>
</compile_context>

<pallas_src>
import functools

import jax
import jax.numpy as jnp
from jax.experimental import pallas as pl
from jax.experimental.pallas import tpu as pltpu


def additive_classifier_kernel(feat_ref, attn_ref, w1_ref, b1_ref, w2_ref, b2_ref,
                               pool_ref, patch_logits_ref, logits_ref, *,
                               mxu_dtype=None):
    # (TM, D) * (TM, 1) broadcast multiply on the VPU, f32.
    attended = attn_ref[...] * feat_ref[...]

    if mxu_dtype is not None:
        a_in = attended.astype(mxu_dtype)
        w1 = w1_ref[...].astype(mxu_dtype)
    else:
        a_in = attended
        w1 = w1_ref[...]

    # Hidden layer: Linear + ReLU      (TM, D) @ (D, H)
    h = jnp.dot(a_in, w1, preferred_element_type=jnp.float32) + b1_ref[...]
    h = jnp.maximum(h, 0.0)

    if mxu_dtype is not None:
        h_in = h.astype(mxu_dtype)
        w2 = w2_ref[...].astype(mxu_dtype)
    else:
        h_in = h
        w2 = w2_ref[...]

    # Output layer: Linear             (TM, H) @ (H, O)
    out = jnp.dot(h_in, w2, preferred_element_type=jnp.float32) + b2_ref[...]
    patch_logits_ref[...] = out

    # Additive pooling over the patch axis as a 0/1 pooling matmul
    # (BB, TM) @ (TM, O) on the MXU -- no 3-D reshape, no XLU sublane reduce.
    logits_ref[...] = jnp.dot(pool_ref[...], out,
                              preferred_element_type=jnp.float32)


def _choose_bags_per_tile(B, N, target_rows=1024):
    """Whole bags per grid step, sized conservatively for double-buffered VMEM
    (well under v7x's 32 MiB scoped / 64 MiB physical budget at these dims)."""
    bb = max(1, target_rows // max(N, 1))
    if bb >= B:
        return B                       # single grid step: block == full array
    return max(8, (bb // 8) * 8)       # multi-tile: sublane (8) alignment


def additive_classifier(features, attention, w1, b1, w2, b2, *,
                        bags_per_tile=None, mxu_dtype=None):
    B, N, D = features.shape
    H = w1.shape[1]
    O = w2.shape[1]

    if bags_per_tile is None:
        BB = _choose_bags_per_tile(B, N)
    else:
        BB = min(bags_per_tile, B)
        if BB < B:
            BB = max(8, (BB // 8) * 8)

    num_tiles = pl.cdiv(B, BB)
    B_pad = num_tiles * BB
    TM = BB * N                                   # rows per grid step

    # Flatten in the wrapper (free in XLA); pad to whole tiles of whole bags.
    feat2 = features.reshape(B * N, D)
    attn2 = attention.reshape(B * N, 1)
    if B_pad != B:
        pad_rows = (B_pad - B) * N
        feat2 = jnp.pad(feat2, ((0, pad_rows), (0, 0)))
        attn2 = jnp.pad(attn2, ((0, pad_rows), (0, 0)))

    # Tile-invariant per-bag sum matrix: pool[b, r] = 1.0 iff row r is in bag b.
    pool = (jnp.arange(TM, dtype=jnp.int32)[None, :] // N
            == jnp.arange(BB, dtype=jnp.int32)[:, None]).astype(jnp.float32)

    kernel = functools.partial(additive_classifier_kernel, mxu_dtype=mxu_dtype)

    # NOTE: O=8 << 128 lanes means the output stores are lane-masked; the output
    # width is fixed by the module spec, so we keep the trailing dim as-is.
    patch_logits2, logits_pad = pl.pallas_call(
        kernel,
        out_shape=(
            jax.ShapeDtypeStruct((B_pad * N, O), jnp.float32),   # patch logits (rows)
            jax.ShapeDtypeStruct((B_pad, O), jnp.float32),       # bag logits
        ),
        grid=(num_tiles,),
        in_specs=[
            pl.BlockSpec((TM, D), lambda i: (i, 0)),     # features rows (pipelined)
            pl.BlockSpec((TM, 1), lambda i: (i, 0)),     # attention rows (pipelined)
            pl.BlockSpec((D, H), lambda i: (0, 0)),      # w1  (VMEM-resident)
            pl.BlockSpec((1, H), lambda i: (0, 0)),      # b1  (VMEM-resident)
            pl.BlockSpec((H, O), lambda i: (0, 0)),      # w2  (VMEM-resident)
            pl.BlockSpec((1, O), lambda i: (0, 0)),      # b2  (VMEM-resident)
            pl.BlockSpec((BB, TM), lambda i: (0, 0)),    # pooling matrix (resident)
        ],
        out_specs=(
            pl.BlockSpec((TM, O), lambda i: (i, 0)),
            pl.BlockSpec((BB, O), lambda i: (i, 0)),
        ),
        compiler_params=pltpu.CompilerParams(
            dimension_semantics=("parallel",)),          # shard steps across v7x TCs
    )(feat2, attn2, w1, b1, w2, b2, pool)

    patch_logits = patch_logits2[: B * N].reshape(B, N, O)
    logits = logits_pad[:B]
    return {"logits": logits, "patch_logits": patch_logits}


def reference(features, attention, w1, b1, w2, b2):
    attended = attention * features
    h = jnp.maximum(attended @ w1 + b1, 0.0)
    patch_logits = h @ w2 + b2
    logits = jnp.sum(patch_logits, axis=1)
    return {"logits": logits, "patch_logits": patch_logits}


if __name__ == "__main__":
    # Small instance matching the module: input_dims=32, hidden=(32,), output_dims=8.
    B, N, D, H, O = 2, 8, 32, 32, 8   # batch, patches, input_dims, hidden, output

    key = jax.random.PRNGKey(0)
    kf, ka, k1, k2, k3, k4 = jax.random.split(key, 6)

    features = jax.random.normal(kf, (B, N, D), dtype=jnp.float32)
    attention = jax.nn.softmax(
        jax.random.normal(ka, (B, N, 1), dtype=jnp.float32), axis=1)

    # Linear layers stored as (in, out) + bias, equivalent to torch's x @ W.T + b.
    w1 = jax.random.normal(k1, (D, H), dtype=jnp.float32) * 0.1
    b1 = jax.random.normal(k2, (1, H), dtype=jnp.float32) * 0.1
    w2 = jax.random.normal(k3, (H, O), dtype=jnp.float32) * 0.1
    b2 = jax.random.normal(k4, (1, O), dtype=jnp.float32) * 0.1

    out = additive_classifier(features, attention, w1, b1, w2, b2)
    jax.block_until_ready(out)

    ref = reference(features, attention, w1, b1, w2, b2)
    assert out["patch_logits"].shape == (B, N, O)
    assert out["logits"].shape == (B, O)
    assert jnp.allclose(out["patch_logits"], ref["patch_logits"], atol=1e-5, rtol=1e-5)
    assert jnp.allclose(out["logits"], ref["logits"], atol=1e-5, rtol=1e-5)

    # Also exercise the multi-tile (gridded + padded) path to make sure the
    # pipelined configuration compiles and matches at a larger bag count.
    B2, N2 = 24, 64
    kf2, ka2 = jax.random.split(jax.random.PRNGKey(1))
    features2 = jax.random.normal(kf2, (B2, N2, D), dtype=jnp.float32)
    attention2 = jax.nn.softmax(
        jax.random.normal(ka2, (B2, N2, 1), dtype=jnp.float32), axis=1)
    out2 = additive_classifier(features2, attention2, w1, b1, w2, b2)
    jax.block_until_ready(out2)
    ref2 = reference(features2, attention2, w1, b1, w2, b2)
    assert jnp.allclose(out2["patch_logits"], ref2["patch_logits"], atol=1e-4, rtol=1e-4)
    assert jnp.allclose(out2["logits"], ref2["logits"], atol=1e-4, rtol=1e-4)

    print("KERNEL_OK")
</pallas_src>

<mosaic_0001>
module attributes {stable_mosaic.version = 11 : i64} {
  func.func @additive_classifier_kernel(%arg0: i32, %arg1: memref<16x32xf32, #tpu.memory_space<vmem>>, %arg2: memref<16x1xf32, #tpu.memory_space<vmem>>, %arg3: memref<32x32xf32, #tpu.memory_space<vmem>>, %arg4: memref<1x32xf32, #tpu.memory_space<vmem>>, %arg5: memref<32x8xf32, #tpu.memory_space<vmem>>, %arg6: memref<1x8xf32, #tpu.memory_space<vmem>>, %arg7: memref<2x16xf32, #tpu.memory_space<vmem>>, %arg8: memref<16x8xf32, #tpu.memory_space<vmem>>, %arg9: memref<2x8xf32, #tpu.memory_space<vmem>>) attributes {dimension_semantics = [#tpu.dimension_semantics<parallel>], iteration_bounds = array<i64: 1>, scalar_prefetch = 0 : i64, scratch_operands = 0 : i64, tpu.core_type = #tpu.core_type<tc>, window_params = [{transform_indices = @transform_0, window_bounds = array<i64: 16, 32>}, {transform_indices = @transform_1, window_bounds = array<i64: 16, 1>}, {pipeline_mode = #tpu.pipeline_mode<synchronous>, transform_indices = @transform_2, window_bounds = array<i64: 32, 32>}, {pipeline_mode = #tpu.pipeline_mode<synchronous>, transform_indices = @transform_3, window_bounds = array<i64: 1, 32>}, {pipeline_mode = #tpu.pipeline_mode<synchronous>, transform_indices = @transform_4, window_bounds = array<i64: 32, 8>}, {pipeline_mode = #tpu.pipeline_mode<synchronous>, transform_indices = @transform_5, window_bounds = array<i64: 1, 8>}, {pipeline_mode = #tpu.pipeline_mode<synchronous>, transform_indices = @transform_6, window_bounds = array<i64: 2, 16>}, {transform_indices = @transform_7, window_bounds = array<i64: 16, 8>}, {transform_indices = @transform_8, window_bounds = array<i64: 2, 8>}]} {
    %c0 = arith.constant 0 : index
    %c0_0 = arith.constant 0 : index
    %0 = vector.load %arg2[%c0, %c0_0] : memref<16x1xf32, #tpu.memory_space<vmem>>, vector<16x1xf32>
    %c0_1 = arith.constant 0 : index
    %c0_2 = arith.constant 0 : index
    %1 = vector.load %arg1[%c0_1, %c0_2] : memref<16x32xf32, #tpu.memory_space<vmem>>, vector<16x32xf32>
    %2 = vector.broadcast %0 : vector<16x1xf32> to vector<16x32xf32>
    %3 = arith.mulf %2, %1 : vector<16x32xf32>
    %c0_3 = arith.constant 0 : index
    %c0_4 = arith.constant 0 : index
    %4 = vector.load %arg3[%c0_3, %c0_4] : memref<32x32xf32, #tpu.memory_space<vmem>>, vector<32x32xf32>
    %cst = arith.constant dense<0.000000e+00> : vector<16x32xf32>
    %5 = tpu.matmul %3, %4, %cst {dimension_numbers = #tpu.dot_dimension_numbers<[1], [0], [0], [1], [0, 0, 1, 1], [], []>} : vector<16x32xf32>, vector<32x32xf32>, vector<16x32xf32> -> vector<16x32xf32>
    %c0_5 = arith.constant 0 : index
    %c0_6 = arith.constant 0 : index
    %6 = vector.load %arg4[%c0_5, %c0_6] : memref<1x32xf32, #tpu.memory_space<vmem>>, vector<1x32xf32>
    %7 = vector.broadcast %6 : vector<1x32xf32> to vector<16x32xf32>
    %8 = arith.addf %5, %7 : vector<16x32xf32>
    %cst_7 = arith.constant 0.000000e+00 : f32
    %9 = vector.broadcast %cst_7 : f32 to vector<16x32xf32>
    %10 = arith.maximumf %8, %9 : vector<16x32xf32>
    %c0_8 = arith.constant 0 : index
    %c0_9 = arith.constant 0 : index
    %11 = vector.load %arg5[%c0_8, %c0_9] : memref<32x8xf32, #tpu.memory_space<vmem>>, vector<32x8xf32>
    %cst_10 = arith.constant dense<0.000000e+00> : vector<16x8xf32>
    %12 = tpu.matmul %10, %11, %cst_10 {dimension_numbers = #tpu.dot_dimension_numbers<[1], [0], [0], [1], [0, 0, 1, 1], [], []>} : vector<16x32xf32>, vector<32x8xf32>, vector<16x8xf32> -> vector<16x8xf32>
    %c0_11 = arith.constant 0 : index
    %c0_12 = arith.constant 0 : index
    %13 = vector.load %arg6[%c0_11, %c0_12] : memref<1x8xf32, #tpu.memory_space<vmem>>, vector<1x8xf32>
    %14 = vector.broadcast %13 : vector<1x8xf32> to vector<16x8xf32>
    %15 = arith.addf %12, %14 : vector<16x8xf32>
    %c0_13 = arith.constant 0 : index
    %c0_14 = arith.constant 0 : index
    %16 = vector.load %arg8[%c0_13, %c0_14] : memref<16x8xf32, #tpu.memory_space<vmem>>, vector<16x8xf32>
    tpu.vector_store %arg8[%c0_13, %c0_14], %15 {strides = array<i32>} : memref<16x8xf32, #tpu.memory_space<vmem>>, vector<16x8xf32>,
    %c0_15 = arith.constant 0 : index
    %c0_16 = arith.constant 0 : index
    %17 = vector.load %arg7[%c0_15, %c0_16] : memref<2x16xf32, #tpu.memory_space<vmem>>, vector<2x16xf32>
    %cst_17 = arith.constant dense<0.000000e+00> : vector<2x8xf32>
    %18 = tpu.matmul %17, %15, %cst_17 {dimension_numbers = #tpu.dot_dimension_numbers<[1], [0], [0], [1], [0, 0, 1, 1], [], []>} : vector<2x16xf32>, vector<16x8xf32>, vector<2x8xf32> -> vector<2x8xf32>
    %c0_18 = arith.constant 0 : index
    %c0_19 = arith.constant 0 : index
    %19 = vector.load %arg9[%c0_18, %c0_19] : memref<2x8xf32, #tpu.memory_space<vmem>>, vector<2x8xf32>
    tpu.vector_store %arg9[%c0_18, %c0_19], %18 {strides = array<i32>} : memref<2x8xf32, #tpu.memory_space<vmem>>, vector<2x8xf32>,
    return
  }
  func.func @transform_0(%arg0: i32) -> (i32, i32) {
    %c0_i32 = arith.constant 0 : i32
    %c0_i32_0 = arith.constant 0 : i32
    return %arg0, %c0_i32 : i32, i32
  }
  func.func @transform_1(%arg0: i32) -> (i32, i32) {
    %c0_i32 = arith.constant 0 : i32
    %c0_i32_0 = arith.constant 0 : i32
    return %arg0, %c0_i32 : i32, i32
  }
  func.func @transform_2(%arg0: i32) -> (i32, i32) {
    %c0_i32 = arith.constant 0 : i32
    %c0_i32_0 = arith.constant 0 : i32
    %c0_i32_1 = arith.constant 0 : i32
    return %c0_i32, %c0_i32_0 : i32, i32
  }
  func.func @transform_3(%arg0: i32) -> (i32, i32) {
    %c0_i32 = arith.constant 0 : i32
    %c0_i32_0 = arith.constant 0 : i32
    %c0_i32_1 = arith.constant 0 : i32
    return %c0_i32, %c0_i32_0 : i32, i32
  }
  func.func @transform_4(%arg0: i32) -> (i32, i32) {
    %c0_i32 = arith.constant 0 : i32
    %c0_i32_0 = arith.constant 0 : i32
    %c0_i32_1 = arith.constant 0 : i32
    return %c0_i32, %c0_i32_0 : i32, i32
  }
  func.func @transform_5(%arg0: i32) -> (i32, i32) {
    %c0_i32 = arith.constant 0 : i32
    %c0_i32_0 = arith.constant 0 : i32
    %c0_i32_1 = arith.constant 0 : i32
    return %c0_i32, %c0_i32_0 : i32, i32
  }
  func.func @transform_6(%arg0: i32) -> (i32, i32) {
    %c0_i32 = arith.constant 0 : i32
    %c0_i32_0 = arith.constant 0 : i32
    %c0_i32_1 = arith.constant 0 : i32
    return %c0_i32, %c0_i32_0 : i32, i32
  }
  func.func @transform_7(%arg0: i32) -> (i32, i32) {
    %c0_i32 = arith.constant 0 : i32
    %c0_i32_0 = arith.constant 0 : i32
    return %arg0, %c0_i32 : i32, i32
  }
  func.func @transform_8(%arg0: i32) -> (i32, i32) {
    %c0_i32 = arith.constant 0 : i32
    %c0_i32_0 = arith.constant 0 : i32
    return %arg0, %c0_i32 : i32, i32
  }
}

</mosaic_0001>

<llo_original>
// kernel: tpu_custom_call.1
$region0: #{tpu_custom_call.1}
  #allocation0 [shape = 'u32[]', space=smem, size = 0x4, offset = 0x4, fixed_abs, tag = 'smem constant byte address 0x4 - core index']
  #allocation1 [shape = 'u32[144,128]{1,0:T(1,128)}', space=vmem, size = 0x12000, scoped, tag = 'internal scratch']
  %s0 = inlined_call_operand.vmem [shape: f32[16,32], index: 0, kind: input, shape index: {}]
  %s1 = inlined_call_operand.vmem [shape: f32[16,1], index: 1, kind: input, shape index: {}]
  %s2 = inlined_call_operand.vmem [shape: f32[32,32], index: 2, kind: input, shape index: {}]
  %s3 = inlined_call_operand.vmem [shape: f32[1,32], index: 3, kind: input, shape index: {}]
  %s4 = inlined_call_operand.vmem [shape: f32[32,8], index: 4, kind: input, shape index: {}]
  %s5 = inlined_call_operand.vmem [shape: f32[1,8], index: 5, kind: input, shape index: {}]
  %s6 = inlined_call_operand.vmem [shape: f32[2,16], index: 6, kind: input, shape index: {}]
  %s7 = inlined_call_operand.vmem [shape: f32[16,8], index: 7, kind: output, shape index: {0}]
  %s8 = inlined_call_operand.hbm [shape: f32[2,8], index: 8, kind: output, shape index: {1}]
  %9 = xla_tuple %s7, %s8
  %s10 = sld [smem:[#allocation0]]
  $region46: #{tpu_custom_call.1} parent=0
    _
  %s12 = ssub.s32 1, %s10
  %s13 = scalar_select 0, %s12, %s10
  $region1: #{tpu_custom_call.1} parent=0
    #allocation2 [shape = 'u8[1024]{0}', space=vmem, size = 0x400, scoped, tag = 'output window, operand 1, single buffered']
    #allocation3 [shape = 's32[1]{0}', space=sflag, size = 0x4, scoped, tag = 'scoped memory for tpu_custom_call.1']
    %14 = vsyncpa [#allocation3], 0
    // Predicated region
    $region2: #{tpu_custom_call.1} parent=1 // pred_check
      _
    $region3: #{tpu_custom_call.1} parent=1 // pred_check_branch
      %16 = sbr.rel (0) target = $region5
    $region4: #{tpu_custom_call.1} parent=1 // pred_region
      _
    $region5: #{tpu_custom_call.1} parent=1 // pred_fallthru
      _
    // Predicated region
    $region6: #{tpu_custom_call.1} parent=1 // pred_check
      _
    $region7: #{tpu_custom_call.1} parent=1 // pred_check_branch
      %18 = sbr.rel (0) target = $region9
    $region8: #{tpu_custom_call.1} parent=1 // pred_region
      _
    $region9: #{tpu_custom_call.1} parent=1 // pred_fallthru
      _
    // Predicated region
    $region10: #{tpu_custom_call.1} parent=1 // pred_check
      _
    $region11: #{tpu_custom_call.1} parent=1 // pred_check_branch
      %20 = sbr.rel (0) target = $region13
    $region12: #{tpu_custom_call.1} parent=1 // pred_region
      _
    $region13: #{tpu_custom_call.1} parent=1 // pred_fallthru
      _
    // Predicated region
    $region14: #{tpu_custom_call.1} parent=1 // pred_check
      _
    $region15: #{tpu_custom_call.1} parent=1 // pred_check_branch
      %22 = sbr.rel (0) target = $region17
    $region16: #{tpu_custom_call.1} parent=1 // pred_region
      _
    $region17: #{tpu_custom_call.1} parent=1 // pred_fallthru
      _
    // Predicated region
    $region18: #{tpu_custom_call.1} parent=1 // pred_check
      _
    $region19: #{tpu_custom_call.1} parent=1 // pred_check_branch
      %24 = sbr.rel (0) target = $region21
    $region20: #{tpu_custom_call.1} parent=1 // pred_region
      _
    $region21: #{tpu_custom_call.1} parent=1 // pred_fallthru
      _
    // Predicated region
    $region22: #{tpu_custom_call.1} parent=1 // pred_check
      _
    $region23: #{tpu_custom_call.1} parent=1 // pred_check_branch
      %26 = sbr.rel (0) target = $region25
    $region24: #{tpu_custom_call.1} parent=1 // pred_region
      _
    $region25: #{tpu_custom_call.1} parent=1 // pred_fallthru
      _
    // Predicated region
    $region26: #{tpu_custom_call.1} parent=1 // pred_check
      _
    $region27: #{tpu_custom_call.1} parent=1 // pred_check_branch
      %28 = sbr.rel (0) target = $region29
    $region28: #{tpu_custom_call.1} parent=1 // pred_region
      _
    $region29: #{tpu_custom_call.1} parent=1 // pred_fallthru
      _
    %v29 = vld [vmem:[%s1] sm:$0xff]
    %v30 = vld [vmem:[%s1 + $0x8] sm:$0xff]
    %v31 = vld [vmem:[%s0] sm:$0xff]
    %v32 = vld [vmem:[%s0 + $0x8] sm:$0xff]
    %34 = vset.pattern.permute.xlu0 0
    %35 = vperm.xlu0 %34, %v29
    %v36 = vpop.permute.xlu0 %35
    %39 = vset.pattern.permute.xlu0 0
    %40 = vperm.xlu0 %39, %v30
    %v41 = vpop.permute.xlu0 %40
    %v43 = vmul.f32 %v36, %v31
    %v44 = vmul.f32 %v41, %v32
    %v45 = vld [vmem:[%s2] sm:$0xff]
    %v46 = vld [vmem:[%s2 + $0x8] sm:$0xff]
    %v47 = vld [vmem:[%s2 + $0x10] sm:$0xff]
    %v48 = vld [vmem:[%s2 + $0x18] sm:$0xff]
    %v49 = vld [vmem:[%s3] sm:$0x1]
    %v51 = vlaneseq
    %v52 = vshrl.u32 %v51, 7
    %v53 = vsub.s32 0, %v52
    %v54 = vrot.slane %v49, %v53
    %vm56 = vcmask 261120
    %v58 = vsel %vm56, %v43, 0
    %v61 = vsel %vm56, %v44, 0
    %63 = vmatprep.subr.mxu0 0.0
    %64 = vmatpush1.msra.mxu0 0.0
    %65 = vmatprep.subr.mxu0 0.0
    %66 = vmatpush1.msra.mxu0 0.0
    %67 = vmatprep.subr.mxu0 0.0
    %68 = vmatpush1.msra.mxu0 0.0
    %69 = vmatprep.subr.mxu0 0.0
    %70 = vmatpush1.msra.mxu0 0.0
    %71 = vmatprep.subr.mxu0 0.0
    %72 = vmatpush1.msra.mxu0 0.0
    %73 = vmatprep.subr.mxu0 0.0
    %74 = vmatpush1.msra.mxu0 0.0
    %75 = vmatprep.subr.mxu0 0.0
    %76 = vmatpush1.msra.mxu0 0.0
    %77 = vmatprep.subr.mxu0 0.0
    %78 = vmatpush1.msra.mxu0 0.0
    %79 = vmatprep.subr.mxu0 0.0
    %80 = vmatpush1.msra.mxu0 0.0
    %81 = vmatprep.subr.mxu0 0.0
    %82 = vmatpush1.msra.mxu0 0.0
    %83 = vmatprep.subr.mxu0 0.0
    %84 = vmatpush1.msra.mxu0 0.0
    %85 = vmatprep.subr.mxu0 0.0
    %86 = vmatpush1.msra.mxu0 0.0
    %87 = vmatprep.subr.mxu0 0.0
    %88 = vmatpush1.msra.mxu0 %v48
    %89 = vmatprep.subr.mxu0 0.0
    %90 = vmatpush1.msra.mxu0 %v47
    %91 = vmatprep.subr.mxu0 0.0
    %92 = vmatpush1.msra.mxu0 %v46
    %93 = vmatprep.subr.mxu0 0.0
    %94 = vmatpush1.msra.mxu0 %v45
    %95 = vmatprep.subr.mxu0 0.0
    %96 = vmatpush2.msra.mxu0 0.0
    %97 = vmatprep.subr.mxu0 0.0
    %98 = vmatpush2.msra.mxu0 0.0
    %99 = vmatprep.subr.mxu0 0.0
    %100 = vmatpush2.msra.mxu0 0.0
    %101 = vmatprep.subr.mxu0 0.0
    %102 = vmatpush2.msra.mxu0 0.0
    %103 = vmatprep.subr.mxu0 0.0
    %104 = vmatpush2.msra.mxu0 0.0
    %105 = vmatprep.subr.mxu0 0.0
    %106 = vmatpush2.msra.mxu0 0.0
    %107 = vmatprep.subr.mxu0 0.0
    %108 = vmatpush2.msra.mxu0 0.0
    %109 = vmatprep.subr.mxu0 0.0
    %110 = vmatpush2.msra.mxu0 0.0
    %111 = vmatprep.subr.mxu0 0.0
    %112 = vmatpush2.msra.mxu0 0.0
    %113 = vmatprep.subr.mxu0 0.0
    %114 = vmatpush2.msra.mxu0 0.0
    %115 = vmatprep.subr.mxu0 0.0
    %116 = vmatpush2.msra.mxu0 0.0
    %117 = vmatprep.subr.mxu0 0.0
    %118 = vmatpush2.msra.mxu0 0.0
    %119 = vmatprep.subr.mxu0 0.0
    %120 = vmatpush2.msra.mxu0 0.0
    %121 = vmatprep.subr.mxu0 0.0
    %122 = vmatpush2.msra.mxu0 0.0
    %123 = vmatprep.subr.mxu0 0.0
    %124 = vmatpush2.msra.mxu0 0.0
    %125 = vmatprep.subr.mxu0 0.0
    %126 = vmatpush2.msra.mxu0 0.0
    %127 = vmatprep.mubr.f32.mxu0 0.0
    %128 = vmatmul.mubr.f32.gmra.mxu0 %v58
    %v129 = vpop.f32.mrf.mxu0
    %v130 = vadd.f32 %v54, %v129
    %v131 = vpop.f32.mrf.mxu0
    %132 = vmatprep.mubr.f32.mxu0 0.0
    %133 = vmatmul.mubr.f32.gmra.mxu0 %v61
    %v134 = vpop.f32.mrf.mxu0
    %v135 = vadd.f32 %v54, %v134
    %v136 = vpop.f32.mrf.mxu0
    %137 = vdwg.mxu0
    %v138 = vmax.f32 %v130, 0.0
    %v139 = vmax.f32 %v135, 0.0
    %v140 = vld [vmem:[%s4] sm:$0xff]
    %v141 = vld [vmem:[%s4 + $0x8] sm:$0xff]
    %v142 = vld [vmem:[%s4 + $0x10] sm:$0xff]
    %v143 = vld [vmem:[%s4 + $0x18] sm:$0xff]
    %v144 = vld [vmem:[%s5] sm:$0x1]
    %v146 = vlaneseq
    %v147 = vshrl.u32 %v146, 7
    %v148 = vsub.s32 0, %v147
    %v149 = vrot.slane %v144, %v148
    %v152 = vsel %vm56, %v138, 0
    %v155 = vsel %vm56, %v139, 0
    %157 = vmatprep.subr.mxu0 0.0
    %158 = vmatpush1.msra.mxu0 0.0
    %159 = vmatprep.subr.mxu0 0.0
    %160 = vmatpush1.msra.mxu0 0.0
    %161 = vmatprep.subr.mxu0 0.0
    %162 = vmatpush1.msra.mxu0 0.0
    %163 = vmatprep.subr.mxu0 0.0
    %164 = vmatpush1.msra.mxu0 0.0
    %165 = vmatprep.subr.mxu0 0.0
    %166 = vmatpush1.msra.mxu0 0.0
    %167 = vmatprep.subr.mxu0 0.0
    %168 = vmatpush1.msra.mxu0 0.0
    %169 = vmatprep.subr.mxu0 0.0
    %170 = vmatpush1.msra.mxu0 0.0
    %171 = vmatprep.subr.mxu0 0.0
    %172 = vmatpush1.msra.mxu0 0.0
    %173 = vmatprep.subr.mxu0 0.0
    %174 = vmatpush1.msra.mxu0 0.0
    %175 = vmatprep.subr.mxu0 0.0
    %176 = vmatpush1.msra.mxu0 0.0
    %177 = vmatprep.subr.mxu0 0.0
    %178 = vmatpush1.msra.mxu0 0.0
    %179 = vmatprep.subr.mxu0 0.0
    %180 = vmatpush1.msra.mxu0 0.0
    %181 = vmatprep.subr.mxu0 0.0
    %182 = vmatpush1.msra.mxu0 %v143
    %183 = vmatprep.subr.mxu0 0.0
    %184 = vmatpush1.msra.mxu0 %v142
    %185 = vmatprep.subr.mxu0 0.0
    %186 = vmatpush1.msra.mxu0 %v141
    %187 = vmatprep.subr.mxu0 0.0
    %188 = vmatpush1.msra.mxu0 %v140
    %189 = vmatprep.subr.mxu0 0.0
    %190 = vmatpush2.msra.mxu0 0.0
    %191 = vmatprep.subr.mxu0 0.0
    %192 = vmatpush2.msra.mxu0 0.0
    %193 = vmatprep.subr.mxu0 0.0
    %194 = vmatpush2.msra.mxu0 0.0
    %195 = vmatprep.subr.mxu0 0.0
    %196 = vmatpush2.msra.mxu0 0.0
    %197 = vmatprep.subr.mxu0 0.0
    %198 = vmatpush2.msra.mxu0 0.0
    %199 = vmatprep.subr.mxu0 0.0
    %200 = vmatpush2.msra.mxu0 0.0
    %201 = vmatprep.subr.mxu0 0.0
    %202 = vmatpush2.msra.mxu0 0.0
    %203 = vmatprep.subr.mxu0 0.0
    %204 = vmatpush2.msra.mxu0 0.0
    %205 = vmatprep.subr.mxu0 0.0
    %206 = vmatpush2.msra.mxu0 0.0
    %207 = vmatprep.subr.mxu0 0.0
    %208 = vmatpush2.msra.mxu0 0.0
    %209 = vmatprep.subr.mxu0 0.0
    %210 = vmatpush2.msra.mxu0 0.0
    %211 = vmatprep.subr.mxu0 0.0
    %212 = vmatpush2.msra.mxu0 0.0
    %213 = vmatprep.subr.mxu0 0.0
    %214 = vmatpush2.msra.mxu0 0.0
    %215 = vmatprep.subr.mxu0 0.0
    %216 = vmatpush2.msra.mxu0 0.0
    %217 = vmatprep.subr.mxu0 0.0
    %218 = vmatpush2.msra.mxu0 0.0
    %219 = vmatprep.subr.mxu0 0.0
    %220 = vmatpush2.msra.mxu0 0.0
    %221 = vmatprep.mubr.f32.mxu0 0.0
    %222 = vmatmul.mubr.f32.gmra.mxu0 %v152
    %v223 = vpop.f32.mrf.mxu0
    %v224 = vadd.f32 %v149, %v223
    %v225 = vpop.f32.mrf.mxu0
    %226 = vmatprep.mubr.f32.mxu0 0.0
    %227 = vmatmul.mubr.f32.gmra.mxu0 %v155
    %v228 = vpop.f32.mrf.mxu0
    %v229 = vadd.f32 %v149, %v228
    %v230 = vpop.f32.mrf.mxu0
    %231 = vdwg.mxu0
    %vm232 = vcmask 64512
    %233 = vst.msk [vmem:[%s7] sm:$0xff] %vm232, %v224
    %234 = vst.msk [vmem:[%s7 + $0x8] sm:$0xff] %vm232, %v229
    %v235 = vld [vmem:[%s6] sm:$0x3]
    %vm236 = vcmask 130048
    %v238 = vsel %vm236, %v235, 0
    %240 = vmatprep.subr.mxu0 0.0
    %241 = vmatpush1.msra.mxu0 0.0
    %242 = vmatprep.subr.mxu0 0.0
    %243 = vmatpush1.msra.mxu0 0.0
    %244 = vmatprep.subr.mxu0 0.0
    %245 = vmatpush1.msra.mxu0 0.0
    %246 = vmatprep.subr.mxu0 0.0
    %247 = vmatpush1.msra.mxu0 0.0
    %248 = vmatprep.subr.mxu0 0.0
    %249 = vmatpush1.msra.mxu0 0.0
    %250 = vmatprep.subr.mxu0 0.0
    %251 = vmatpush1.msra.mxu0 0.0
    %252 = vmatprep.subr.mxu0 0.0
    %253 = vmatpush1.msra.mxu0 0.0
    %254 = vmatprep.subr.mxu0 0.0
    %255 = vmatpush1.msra.mxu0 0.0
    %256 = vmatprep.subr.mxu0 0.0
    %257 = vmatpush1.msra.mxu0 0.0
    %258 = vmatprep.subr.mxu0 0.0
    %259 = vmatpush1.msra.mxu0 0.0
    %260 = vmatprep.subr.mxu0 0.0
    %261 = vmatpush1.msra.mxu0 0.0
    %262 = vmatprep.subr.mxu0 0.0
    %263 = vmatpush1.msra.mxu0 0.0
    %264 = vmatprep.subr.mxu0 0.0
    %265 = vmatpush1.msra.mxu0 0.0
    %266 = vmatprep.subr.mxu0 0.0
    %267 = vmatpush1.msra.mxu0 0.0
    %268 = vmatprep.subr.mxu0 0.0
    %269 = vmatpush1.msra.mxu0 %v229
    %270 = vmatprep.subr.mxu0 0.0
    %271 = vmatpush1.msra.mxu0 %v224
    %272 = vmatprep.subr.mxu0 0.0
    %273 = vmatpush2.msra.mxu0 0.0
    %274 = vmatprep.subr.mxu0 0.0
    %275 = vmatpush2.msra.mxu0 0.0
    %276 = vmatprep.subr.mxu0 0.0
    %277 = vmatpush2.msra.mxu0 0.0
    %278 = vmatprep.subr.mxu0 0.0
    %279 = vmatpush2.msra.mxu0 0.0
    %280 = vmatprep.subr.mxu0 0.0
    %281 = vmatpush2.msra.mxu0 0.0
    %282 = vmatprep.subr.mxu0 0.0
    %283 = vmatpush2.msra.mxu0 0.0
    %284 = vmatprep.subr.mxu0 0.0
    %285 = vmatpush2.msra.mxu0 0.0
    %286 = vmatprep.subr.mxu0 0.0
    %287 = vmatpush2.msra.mxu0 0.0
    %288 = vmatprep.subr.mxu0 0.0
    %289 = vmatpush2.msra.mxu0 0.0
    %290 = vmatprep.subr.mxu0 0.0
    %291 = vmatpush2.msra.mxu0 0.0
    %292 = vmatprep.subr.mxu0 0.0
    %293 = vmatpush2.msra.mxu0 0.0
    %294 = vmatprep.subr.mxu0 0.0
    %295 = vmatpush2.msra.mxu0 0.0
    %296 = vmatprep.subr.mxu0 0.0
    %297 = vmatpush2.msra.mxu0 0.0
    %298 = vmatprep.subr.mxu0 0.0
    %299 = vmatpush2.msra.mxu0 0.0
    %300 = vmatprep.subr.mxu0 0.0
    %301 = vmatpush2.msra.mxu0 0.0
    %302 = vmatprep.subr.mxu0 0.0
    %303 = vmatpush2.msra.mxu0 0.0
    %304 = vmatprep.mubr.f32.mxu0 0.0
    %305 = vmatmul.mubr.f32.gmra.mxu0 %v238
    %v306 = vpop.f32.mrf.mxu0
    %v307 = vadd.f32 0.0, %v306
    %v308 = vpop.f32.mrf.mxu0
    %309 = vdwg.mxu0
    %vm310 = vcmask 58368
    %311 = vst.msk [vmem:[#allocation2] sm:$0x3] %vm310, %v307
    // Predicated region
    $region30: #{tpu_custom_call.1} parent=1 // pred_check
      _
    $region31: #{tpu_custom_call.1} parent=1 // pred_check_branch
      %313 = sbr.rel (0) target = $region33
    $region32: #{tpu_custom_call.1} parent=1 // pred_region
      _
    $region33: #{tpu_custom_call.1} parent=1 // pred_fallthru
      _
    // Predicated region
    $region34: #{tpu_custom_call.1} parent=1 // pred_check
      _
    $region35: #{tpu_custom_call.1} parent=1 // pred_check_branch
      %315 = sbr.rel (0) target = $region37
    $region36: #{tpu_custom_call.1} parent=1 // pred_region
      %s317 = ssub.s32 32, 32
      %318 = vsyncadd [#allocation3], %s317
      %s320 = sshll.u32 [#allocation2], 4
      %s321 = int_to_ptr.vmem [resolvable:$true] %s320
      %323 = dma.vmem_to_hbm [thread:$0]  %s321, 32, %s8, [#allocation3]
    $region37: #{tpu_custom_call.1} parent=1 // pred_fallthru
      _
    // Predicated region
    $region38: #{tpu_custom_call.1} parent=1 // pred_check
      _
    $region39: #{tpu_custom_call.1} parent=1 // pred_check_branch
      %325 = sbr.rel (0) target = $region41
    $region40: #{tpu_custom_call.1} parent=1 // pred_region
      _
    $region41: #{tpu_custom_call.1} parent=1 // pred_fallthru
      _
    // Predicated region
    $region42: #{tpu_custom_call.1} parent=1 // pred_check
      _
    $region43: #{tpu_custom_call.1} parent=1 // pred_check_branch
      %327 = sbr.rel (0) target = $region45
    $region44: #{tpu_custom_call.1} parent=1 // pred_region
      %328 = dma.done [#allocation3], 32
    $region45: #{tpu_custom_call.1} parent=1 // pred_fallthru
      _
    %329 = vsyncpa [#allocation3], 1

</llo_original>
